<compile_context>
chip_gen: v7x
topology: tpu7x:2x2x1
jax: 0.10.0
libtpu: 0.0.40
codegen_flags: <defaults>
</compile_context>

<pallas_src>
import jax
import jax.numpy as jnp
from jax.experimental import pallas as pl
from jax.experimental.pallas import tpu as pltpu


def _spectrum_conv_kernel(x_rows_ref, x_diag_ref, a_ref, scale_ref):
    # Grid = (row band i [parallel], output column block k [arbitrary]).
    #   x_rows_ref : (TM, N)  full-width row band; block index (i, 0), so it is
    #                DMA'd once per row band and stays resident across k.
    #   x_diag_ref : (TM, TM) diagonal block of this row band (block (i, i)).
    #   a_ref      : (TM, TM) output block (i, k).
    #   scale_ref  : (TM, 1)  VMEM scratch holding d_i * d_i.
    i = pl.program_id(0)
    k = pl.program_id(1)

    @pl.when(k == 0)
    def _():
        # Row sums of the ORIGINAL input over the full, unpadded row.
        row_sum = jnp.sum(x_rows_ref[...], axis=1, keepdims=True)   # (TM, 1)
        d = jax.lax.rsqrt(row_sum)          # rowsum ** -0.5 (NaN if negative)
        scale_ref[...] = d * d              # d_i * d_i

    @pl.when(k != i)
    def _():
        # Off-diagonal block: pure zeros, plain constant store stream.
        a_ref[...] = jnp.zeros_like(a_ref)

    @pl.when(k == i)
    def _():
        # Diagonal block: mask/select is only (TM, TM), never (TM, N).
        rows = jax.lax.broadcasted_iota(jnp.int32, a_ref.shape, 0)
        cols = jax.lax.broadcasted_iota(jnp.int32, a_ref.shape, 1)
        vals = (x_diag_ref[...] + 1.0) * scale_ref[...]
        a_ref[...] = jnp.where(rows == cols, vals, 0.0)


def _vmem_plan():
    """Return (buffer_budget_bytes, vmem_limit_bytes, physical_cap_or_None)."""
    cap = None
    try:
        info = pltpu.get_tpu_info()
        cap = getattr(info, "vmem_capacity_bytes", None)
    except Exception:
        cap = None
    if not cap or cap <= 0:
        # Unknown generation: stay safe for v7x's 64 MiB physical VMEM per TC.
        return 40 * 1024 * 1024, 56 * 1024 * 1024, None
    budget = max(min(int(cap * 0.75), cap - 16 * 1024 * 1024), 24 * 1024 * 1024)
    limit = max(min(cap - 8 * 1024 * 1024, budget + 16 * 1024 * 1024),
                budget + 4 * 1024 * 1024)
    return budget, limit, cap


def _footprint(tm, n):
    # 2x double-buffered (TM, N) row band                : 8 * tm * n
    # 2x double-buffered (TM, TM) diag input + output    : 16 * tm * tm
    # diag-branch temporaries (iotas / mask / select)    : ~24 * tm * tm
    return 8 * tm * n + 40 * tm * tm + (2 << 20)


def _pick_tile(n, budget):
    if n <= 128:
        return n  # single full-dim block (always layout-legal)
    # Keep >= 2 row bands whenever possible so the "parallel" grid axis can be
    # split across both v7x TensorCores.
    cap = max(128, ((n // 2) // 128) * 128)
    for cand in (1024, 768, 512, 384, 256, 128):
        if cand <= cap and _footprint(cand, n) <= budget:
            return cand
    # Graceful floor for very large N (limit is widened in the wrapper).
    return 128


def spectrum_convolution_nn_forward(x):
    """x: (N, N) float adjacency matrix. Returns the normalized A, (N, N) f32."""
    x = jnp.asarray(x, jnp.float32)
    n = x.shape[0]
    assert x.ndim == 2 and x.shape == (n, n), "input must be a square matrix"

    budget, vmem_limit, cap = _vmem_plan()
    tm = _pick_tile(n, budget)

    # If even the TM=128 floor exceeds the planned budget (huge N), widen the
    # scoped-VMEM limit as far as the hardware allows instead of failing.
    needed = _footprint(tm, n)
    if needed + (4 << 20) > vmem_limit:
        vmem_limit = needed + (8 << 20)
        if cap:
            vmem_limit = min(vmem_limit, cap - (4 << 20))
    # TODO(synk): for N so large that one double-buffered (128, N) row band no
    # longer fits physical VMEM (N beyond ~4e5 f32 on v7x), switch to a
    # two-pass (row-sum pass, then diagonal-writer pass) kernel.

    r = pl.cdiv(n, tm)          # row bands == output column blocks (square tiles)
    grid = (r, r)

    out = pl.pallas_call(
        _spectrum_conv_kernel,
        out_shape=jax.ShapeDtypeStruct((n, n), jnp.float32),
        grid=grid,
        in_specs=[
            # Full-width row band for exact row sums (resident across k).
            pl.BlockSpec((tm, n), lambda i, k: (i, 0)),
            # Diagonal (TM, TM) block of the SAME input, addressed purely via
            # the index_map -> no dynamic lane slicing inside the kernel.
            pl.BlockSpec((tm, tm), lambda i, k: (i, i)),
        ],
        out_specs=pl.BlockSpec((tm, tm), lambda i, k: (i, k)),
        scratch_shapes=[pltpu.VMEM((tm, 1), jnp.float32)],
        compiler_params=pltpu.CompilerParams(
            dimension_semantics=("parallel", "arbitrary"),
            vmem_limit_bytes=int(vmem_limit),
        ),
    )(x, x)
    return out


def _reference(x):
    # Pure-JAX reference mirroring the PyTorch forward exactly.
    row_sum = jnp.sum(x, axis=1)
    d_val = row_sum ** -0.5
    d_mat = jnp.diag(d_val)
    a = x + jnp.ones_like(x)
    a = d_mat * a
    a = a * d_mat
    return a


if __name__ == "__main__":
    key = jax.random.PRNGKey(0)
    k1, k2, k3 = jax.random.split(key, 3)

    # Case 1: N multiple of 128 -> 2x2 block grid, both pl.when branches run.
    n1 = 256
    x1 = jax.random.uniform(k1, (n1, n1), jnp.float32, 0.5, 1.5)
    out1 = jax.block_until_ready(spectrum_convolution_nn_forward(x1))
    ref1 = _reference(x1)
    assert out1.shape == (n1, n1) and out1.dtype == jnp.float32
    assert jnp.allclose(out1, ref1, atol=1e-5, rtol=1e-5), "mismatch (N=256)"

    # Case 2: N NOT a multiple of 128 -> ragged row/col tails, NO padding pass.
    n2 = 200
    x2 = jax.random.uniform(k2, (n2, n2), jnp.float32, 0.5, 1.5)
    out2 = jax.block_until_ready(spectrum_convolution_nn_forward(x2))
    ref2 = _reference(x2)
    assert out2.shape == (n2, n2) and out2.dtype == jnp.float32
    assert jnp.allclose(out2, ref2, atol=1e-5, rtol=1e-5), "mismatch (N=200)"

    # Case 3: small N (< 128) single-block path + one negative row sum, which
    # must produce NaN on that diagonal entry exactly like numpy rowsum**-0.5.
    n3 = 64
    x3 = jax.random.uniform(k3, (n3, n3), jnp.float32, 0.5, 1.5)
    x3 = x3.at[3].set(-x3[3])
    out3 = jax.block_until_ready(spectrum_convolution_nn_forward(x3))
    ref3 = _reference(x3)
    assert out3.shape == (n3, n3) and out3.dtype == jnp.float32
    assert jnp.allclose(out3, ref3, atol=1e-5, rtol=1e-5,
                        equal_nan=True), "mismatch (N=64, negative row sum)"

    print("KERNEL_OK")
</pallas_src>

<mosaic_0001>
module attributes {stable_mosaic.version = 11 : i64} {
  func.func @_spectrum_conv_kernel(%arg0: i32, %arg1: i32, %arg2: memref<128x256xf32, #tpu.memory_space<vmem>>, %arg3: memref<128x128xf32, #tpu.memory_space<vmem>>, %arg4: memref<128x128xf32, #tpu.memory_space<vmem>>, %arg5: memref<128x1xf32, #tpu.memory_space<vmem>>) attributes {dimension_semantics = [#tpu.dimension_semantics<parallel>, #tpu.dimension_semantics<arbitrary>], iteration_bounds = array<i64: 2, 2>, scalar_prefetch = 0 : i64, scratch_operands = 1 : i64, tpu.core_type = #tpu.core_type<tc>, window_params = [{transform_indices = @transform_0, window_bounds = array<i64: 128, 256>}, {transform_indices = @transform_1, window_bounds = array<i64: 128, 128>}, {transform_indices = @transform_2, window_bounds = array<i64: 128, 128>}]} {
    %c0_i32 = arith.constant 0 : i32
    %0 = arith.cmpi eq, %arg1, %c0_i32 : i32
    %1 = arith.extui %0 : i1 to i32
    %c0_i32_0 = arith.constant 0 : i32
    %2 = arith.cmpi ne, %1, %c0_i32_0 : i32
    scf.if %2 {
      %c0 = arith.constant 0 : index
      %c0_3 = arith.constant 0 : index
      %9 = vector.load %arg2[%c0, %c0_3] : memref<128x256xf32, #tpu.memory_space<vmem>>, vector<128x256xf32>
      %cst = arith.constant dense<0.000000e+00> : vector<128xf32>
      %10 = vector.multi_reduction <add>, %9, %cst [1] : vector<128x256xf32> to vector<128xf32>
      %11 = vector.shape_cast %10 : vector<128xf32> to vector<128x1xf32>
      %12 = math.rsqrt %11 : vector<128x1xf32>
      %13 = arith.mulf %12, %12 : vector<128x1xf32>
      %c0_4 = arith.constant 0 : index
      %c0_5 = arith.constant 0 : index
      %14 = vector.load %arg5[%c0_4, %c0_5] : memref<128x1xf32, #tpu.memory_space<vmem>>, vector<128x1xf32>
      tpu.vector_store %arg5[%c0_4, %c0_5], %13 {strides = array<i32>} : memref<128x1xf32, #tpu.memory_space<vmem>>, vector<128x1xf32>,
    } else {
    }
    %3 = arith.cmpi ne, %arg1, %arg0 : i32
    %4 = arith.extui %3 : i1 to i32
    %c0_i32_1 = arith.constant 0 : i32
    %5 = arith.cmpi ne, %4, %c0_i32_1 : i32
    scf.if %5 {
      %cst = arith.constant 0.000000e+00 : f32
      %9 = vector.broadcast %cst : f32 to vector<128x128xf32>
      %c0 = arith.constant 0 : index
      %c0_3 = arith.constant 0 : index
      %10 = vector.load %arg4[%c0, %c0_3] : memref<128x128xf32, #tpu.memory_space<vmem>>, vector<128x128xf32>
      tpu.vector_store %arg4[%c0, %c0_3], %9 {strides = array<i32>} : memref<128x128xf32, #tpu.memory_space<vmem>>, vector<128x128xf32>,
    } else {
    }
    %6 = arith.cmpi eq, %arg1, %arg0 : i32
    %7 = arith.extui %6 : i1 to i32
    %c0_i32_2 = arith.constant 0 : i32
    %8 = arith.cmpi ne, %7, %c0_i32_2 : i32
    scf.if %8 {
      %9 = tpu.iota {dimensions = array<i32: 0>} : vector<128x128xi32>
      %10 = tpu.iota {dimensions = array<i32: 1>} : vector<128x128xi32>
      %c0 = arith.constant 0 : index
      %c0_3 = arith.constant 0 : index
      %11 = vector.load %arg3[%c0, %c0_3] : memref<128x128xf32, #tpu.memory_space<vmem>>, vector<128x128xf32>
      %cst = arith.constant 1.000000e+00 : f32
      %12 = vector.broadcast %cst : f32 to vector<128x128xf32>
      %13 = arith.addf %11, %12 : vector<128x128xf32>
      %c0_4 = arith.constant 0 : index
      %c0_5 = arith.constant 0 : index
      %14 = vector.load %arg5[%c0_4, %c0_5] : memref<128x1xf32, #tpu.memory_space<vmem>>, vector<128x1xf32>
      %15 = vector.broadcast %14 : vector<128x1xf32> to vector<128x128xf32>
      %16 = arith.mulf %13, %15 : vector<128x128xf32>
      %17 = arith.cmpi eq, %9, %10 : vector<128x128xi32>
      %cst_6 = arith.constant 0.000000e+00 : f32
      %18 = vector.broadcast %cst_6 : f32 to vector<128x128xf32>
      %19 = arith.select %17, %16, %18 : vector<128x128xi1>, vector<128x128xf32>
      %c0_7 = arith.constant 0 : index
      %c0_8 = arith.constant 0 : index
      %20 = vector.load %arg4[%c0_7, %c0_8] : memref<128x128xf32, #tpu.memory_space<vmem>>, vector<128x128xf32>
      tpu.vector_store %arg4[%c0_7, %c0_8], %19 {strides = array<i32>} : memref<128x128xf32, #tpu.memory_space<vmem>>, vector<128x128xf32>,
    } else {
    }
    return
  }
  func.func @transform_0(%arg0: i32, %arg1: i32) -> (i32, i32) {
    %c0_i32 = arith.constant 0 : i32
    %c0_i32_0 = arith.constant 0 : i32
    return %arg0, %c0_i32 : i32, i32
  }
  func.func @transform_1(%arg0: i32, %arg1: i32) -> (i32, i32) {
    %c0_i32 = arith.constant 0 : i32
    return %arg0, %arg0 : i32, i32
  }
  func.func @transform_2(%arg0: i32, %arg1: i32) -> (i32, i32) {
    %c0_i32 = arith.constant 0 : i32
    return %arg0, %arg1 : i32, i32
  }
}

</mosaic_0001>

<llo_original>
// kernel: tpu_custom_call.1
$region0: #{tpu_custom_call.1}
  #allocation0 [shape = 'u32[]', space=smem, size = 0x4, offset = 0x4, fixed_abs, tag = 'smem constant byte address 0x4 - core index']
  #allocation1 [shape = 'u32[144,128]{1,0:T(1,128)}', space=vmem, size = 0x12000, scoped, tag = 'internal scratch']
  #allocation2 [shape = 'f32[128,1]{1,0:T(8,128)}', space=vmem, size = 0x10000, scoped, tag = 'scratch operand']
  %s0 = inlined_call_operand.hbm [shape: f32[256,256], index: 0, kind: input, shape index: {}]
  %s1 = inlined_call_operand.hbm [shape: f32[256,256], index: 1, kind: input, shape index: {}]
  %s2 = inlined_call_operand.hbm [shape: f32[256,256], index: 2, kind: output, shape index: {}]
  %s3 = sld [smem:[#allocation0]]
  $region61: #{tpu_custom_call.1} parent=0
    _
  %s5 = ssub.s32 1, %s3
  %s6 = scalar_select 0, %s5, %s3
  $region1: #{tpu_custom_call.1} parent=0
    #allocation3 [shape = 'u8[262144]{0}', space=vmem, size = 0x40000, scoped, tag = 'input window, operand 0']
    #allocation4 [shape = 's32[2]{0}', space=sflag, size = 0x8, scoped, tag = 'scoped memory for tpu_custom_call.1']
    #allocation5 [shape = 's32[2]{0}', space=sflag, size = 0x8, scoped, tag = 'scoped memory for tpu_custom_call.1']
    #allocation6 [shape = 'u8[131072]{0}', space=vmem, size = 0x20000, scoped, tag = 'input window, operand 1']
    #allocation7 [shape = 's32[2]{0}', space=sflag, size = 0x8, scoped, tag = 'scoped memory for tpu_custom_call.1']
    #allocation8 [shape = 'u8[131072]{0}', space=vmem, size = 0x20000, scoped, tag = 'output window, operand 0']
    %7 = vsyncpa [#allocation4], 0
    %s8 = scalar_lea.sflag [#allocation4], 1
    %9 = vsyncpa %s8, 0
    %10 = vsyncpa [#allocation7], 0
    %s11 = scalar_lea.sflag [#allocation7], 1
    %12 = vsyncpa %s11, 0
    %13 = vsyncpa [#allocation5], 0
    %s14 = scalar_lea.sflag [#allocation5], 1
    %15 = vsyncpa %s14, 0
    loop: start=0, step=1, limit=6
    $region2: #{tpu_custom_call.1} parent=1 // loop_pre_header
      _
    $region3: #{tpu_custom_call.1} parent=1 // loop_header
      %s17 = sphi 0, %s21
      %p18 = scmp.ge.s32.totalorder %s17, 6
      %s24 = sphi 0, %s36
      %s25 = sphi 0, %s32
      %s26 = sphi 0, %s24
      %s27 = sphi 0, %s25
      %s28 = sphi 0, %s26
      %s29 = sphi 0, %s27
      %s39 = sphi 0, %s41
      %s42 = sphi 0, %s39
      %s43 = sphi 0, %s42
      %s59 = sphi 0, %s43
      %s67 = sphi 0, %s69
      %s70 = sphi 0, %s67
      %s71 = sphi 0, %s70
      %s87 = sphi 0, %s71
      %s95 = sphi 0, %s97
      %s98 = sphi 0, %s95
      %s99 = sphi 0, %s98
      %s115 = sphi 0, %s99
    $region4: #{tpu_custom_call.1} parent=1 // loop_header_branch
      %20 = sbr.rel (%p18) target = $region8
    $region5: #{tpu_custom_call.1} parent=1 // loop_body
      %s22 = ssub.s32 %s17, 1
      %s23 = ssub.s32 %s17, 2
      %s30 = sadd.s32 1, %s25
      %p31 = scmp.ge.s32.totalorder %s30, 2
      %s32 = scalar_select %p31, 0, %s30
      %s33 = sadd.s32 1, %s24
      %s34 = scalar_select %p31, %s33, %s24
      %p35 = scmp.ge.s32.totalorder %s34, 2
      %s36 = scalar_select %p35, 0, %s34
      %s37 = ssub.s32 %s24, %s36
      %p38 = scmp.eq.s32.totalorder %s37, 0
      %s40 = sadd.s32 %s39, 1
      %s41 = scalar_select %p38, %s39, %s40
      %p44 = pneg %p38
      %p45 = scmp.eq.s32.totalorder %s17, 3
      %p46 = por %p44, %p45
      %p47 = scmp.ne.s32.totalorder %s39, %s42
      %p48 = scmp.eq.s32.totalorder %s17, 0
      %p49 = por %p47, %p48
      %p50 = scmp.ne.s32.totalorder %s39, %s42
      %p51 = scmp.eq.s32.totalorder %s22, 3
      %p52 = por %p50, %p51
      %p53 = scmp.ne.s32.totalorder %s42, %s43
      %p54 = scmp.eq.s32.totalorder %s22, 0
      %p55 = por %p53, %p54
      %p56 = scmp.ne.s32.totalorder %s42, %s43
      %p57 = scmp.eq.s32.totalorder %s23, 3
      %p58 = por %p56, %p57
      %p60 = scmp.ne.s32.totalorder %s43, %s59
      %p61 = scmp.eq.s32.totalorder %s23, 0
      %p62 = por %p60, %p61
      %s63 = ssub.s32 %s24, %s36
      %s64 = ssub.s32 %s24, %s36
      %s65 = sor.u32 %s63, %s64
      %p66 = scmp.eq.s32.totalorder %s65, 0
      %s68 = sadd.s32 %s67, 1
      %s69 = scalar_select %p66, %s67, %s68
      %p72 = pneg %p66
      %p73 = scmp.eq.s32.totalorder %s17, 3
      %p74 = por %p72, %p73
      %p75 = scmp.ne.s32.totalorder %s67, %s70
      %p76 = scmp.eq.s32.totalorder %s17, 0
      %p77 = por %p75, %p76
      %p78 = scmp.ne.s32.totalorder %s67, %s70
      %p79 = scmp.eq.s32.totalorder %s22, 3
      %p80 = por %p78, %p79
      %p81 = scmp.ne.s32.totalorder %s70, %s71
      %p82 = scmp.eq.s32.totalorder %s22, 0
      %p83 = por %p81, %p82
      %p84 = scmp.ne.s32.totalorder %s70, %s71
      %p85 = scmp.eq.s32.totalorder %s23, 3
      %p86 = por %p84, %p85
      %p88 = scmp.ne.s32.totalorder %s71, %s87
      %p89 = scmp.eq.s32.totalorder %s23, 0
      %p90 = por %p88, %p89
      %s91 = ssub.s32 %s24, %s36
      %s92 = ssub.s32 %s25, %s32
      %s93 = sor.u32 %s91, %s92
      %p94 = scmp.eq.s32.totalorder %s93, 0
      %s96 = sadd.s32 %s95, 1
      %s97 = scalar_select %p94, %s95, %s96
      %p100 = pneg %p94
      %p101 = scmp.eq.s32.totalorder %s17, 3
      %p102 = por %p100, %p101
      %p103 = scmp.ne.s32.totalorder %s95, %s98
      %p104 = scmp.eq.s32.totalorder %s17, 0
      %p105 = por %p103, %p104
      %p106 = scmp.ne.s32.totalorder %s95, %s98
      %p107 = scmp.eq.s32.totalorder %s22, 3
      %p108 = por %p106, %p107
      %p109 = scmp.ne.s32.totalorder %s98, %s99
      %p110 = scmp.eq.s32.totalorder %s22, 0
      %p111 = por %p109, %p110
      %p112 = scmp.ne.s32.totalorder %s98, %s99
      %p113 = scmp.eq.s32.totalorder %s23, 3
      %p114 = por %p112, %p113
      %p116 = scmp.ne.s32.totalorder %s99, %s115
      %p117 = scmp.eq.s32.totalorder %s23, 0
      %p118 = por %p116, %p117
      %p119 = scmp.le.s32.totalorder 1, %s17
      %p120 = scmp.lt.s32.totalorder %s17, 5
      %p121 = pnand %p119, %p120
      %p122 = pneg %p121
      // Predicated region
      $region9: #{tpu_custom_call.1} parent=5 // pred_check
        _
      $region10: #{tpu_custom_call.1} parent=5 // pred_check_branch
        %124 = sbr.rel (%p121) target = $region12
      $region11: #{tpu_custom_call.1} parent=5 // pred_region
        %s125 = ssub.s32 %s17, 1
      $region12: #{tpu_custom_call.1} parent=5 // pred_fallthru
        _
      %p126 = scmp.lt.s32.totalorder %s17, 4
      // Predicated region
      $region13: #{tpu_custom_call.1} parent=5 // pred_check
        %p127 = pneg %p126
      $region14: #{tpu_custom_call.1} parent=5 // pred_check_branch
        %129 = sbr.rel (%p127) target = $region16
      $region15: #{tpu_custom_call.1} parent=5 // pred_region
        // Predicated region
        $region17: #{tpu_custom_call.1} parent=15 // pred_check
          %p130 = pneg %p49
        $region18: #{tpu_custom_call.1} parent=15 // pred_check_branch
          %132 = sbr.rel (%p130) target = $region20
        $region19: #{tpu_custom_call.1} parent=15 // pred_region
          %s133 = sand.u32 %s39, 1
          %s134 = scalar_lea.sflag [#allocation4], %s133
          %s135 = sand.u32 %s39, 1
          %s136 = smul.addr %s135, 256
          %s137 = scalar_lea.vmem [#allocation3], %s136
          %s138 = smul.u32 16, %s24
          %s140 = ssub.s32 4096, 4096
          %141 = vsyncadd %s134, %s140
          %s142 = smul.addr %s138, 2
          %s143 = smul.addr %s142, 128
          %s144 = scalar_lea.hbm %s0, %s143
          %s145 = sshll.u32 %s137, 4
          %s146 = int_to_ptr.vmem [resolvable:$true] %s145
          %151 = dma.hbm_to_vmem [thread:$0]  %s144, 4096, %s146, %s134, 256, 256, 16
        $region20: #{tpu_custom_call.1} parent=15 // pred_fallthru
          _
        // Predicated region
        $region21: #{tpu_custom_call.1} parent=15 // pred_check
          %p152 = pneg %p77
        $region22: #{tpu_custom_call.1} parent=15 // pred_check_branch
          %154 = sbr.rel (%p152) target = $region24
        $region23: #{tpu_custom_call.1} parent=15 // pred_region
          %s155 = sand.u32 %s67, 1
          %s156 = scalar_lea.sflag [#allocation7], %s155
          %s157 = sand.u32 %s67, 1
          %s158 = smul.addr %s157, 128
          %s159 = scalar_lea.vmem [#allocation6], %s158
          %s160 = smul.u32 16, %s24
          %s162 = ssub.s32 2048, 2048
          %163 = vsyncadd %s156, %s162
          %s164 = smul.addr %s160, 2
          %s165 = sadd.s32 %s24, %s164
          %s166 = smul.addr %s165, 128
          %s167 = scalar_lea.hbm %s1, %s166
          %s168 = sshll.u32 %s159, 4
          %s169 = int_to_ptr.vmem [resolvable:$true] %s168
          %174 = dma.hbm_to_vmem [thread:$0]  %s167, 2048, %s169, %s156, 256, 128, 8
        $region24: #{tpu_custom_call.1} parent=15 // pred_fallthru
          _
      $region16: #{tpu_custom_call.1} parent=5 // pred_fallthru
        _
      %p175 = scmp.le.s32.totalorder 1, %s17
      %p176 = scmp.lt.s32.totalorder %s17, 5
      %p177 = pnand %p175, %p176
      %p178 = pneg %p177
      // Predicated region
      $region25: #{tpu_custom_call.1} parent=5 // pred_check
        _
      $region26: #{tpu_custom_call.1} parent=5 // pred_check_branch
        %180 = sbr.rel (%p177) target = $region28
      $region27: #{tpu_custom_call.1} parent=5 // pred_region
        %s181 = ssub.s32 %s17, 1
        %s182 = sand.u32 %s42, 1
        %s183 = scalar_lea.sflag [#allocation4], %s182
        %s184 = sand.u32 %s42, 1
        %s185 = smul.addr %s184, 256
        %s186 = scalar_lea.vmem [#allocation3], %s185
        // Predicated region
        $region29: #{tpu_custom_call.1} parent=27 // pred_check
          %p187 = pneg %p55
        $region30: #{tpu_custom_call.1} parent=27 // pred_check_branch
          %189 = sbr.rel (%p187) target = $region32
        $region31: #{tpu_custom_call.1} parent=27 // pred_region
          %190 = dma.done %s183, 4096
        $region32: #{tpu_custom_call.1} parent=27 // pred_fallthru
          _
        %s191 = sand.u32 %s70, 1
        %s192 = scalar_lea.sflag [#allocation7], %s191
        %s193 = sand.u32 %s70, 1
        %s194 = smul.addr %s193, 128
        %s195 = scalar_lea.vmem [#allocation6], %s194
        // Predicated region
        $region33: #{tpu_custom_call.1} parent=27 // pred_check
          %p196 = pneg %p83
        $region34: #{tpu_custom_call.1} parent=27 // pred_check_branch
          %198 = sbr.rel (%p196) target = $region36
        $region35: #{tpu_custom_call.1} parent=27 // pred_region
          %199 = dma.done %s192, 2048
        $region36: #{tpu_custom_call.1} parent=27 // pred_fallthru
          _
        %s200 = sand.u32 %s42, 1
        %s201 = scalar_lea.sflag [#allocation4], %s200
        %s202 = sand.u32 %s42, 1
        %s203 = smul.addr %s202, 256
        %s204 = scalar_lea.vmem [#allocation3], %s203
        %p205 = pneg %p55
        %p206 = pneg %p52
        %s207 = sand.u32 %s70, 1
        %s208 = scalar_lea.sflag [#allocation7], %s207
        %s209 = sand.u32 %s70, 1
        %s210 = smul.addr %s209, 128
        %s211 = scalar_lea.vmem [#allocation6], %s210
        %p212 = pneg %p83
        %p213 = pneg %p80
        %p214 = pneg %p111
        %p215 = pneg %p108
        %s216 = sand.u32 %s98, 1
        %s217 = scalar_lea.sflag [#allocation5], %s216
        %s218 = sand.u32 %s98, 1
        %s219 = smul.addr %s218, 128
        %s220 = scalar_lea.vmem [#allocation8], %s219
        %s221 = smul.u32 16, %s26
        %s222 = smul.u32 16, %s26
        %s223 = smul.u32 16, %s26
        %p224 = scmp.eq.s32.totalorder %s27, 0
        // Predicated region
        $region37: #{tpu_custom_call.1} parent=27 // pred_check
          %p225 = pneg %p224
        $region38: #{tpu_custom_call.1} parent=27 // pred_check_branch
          %227 = sbr.rel (%p225) target = $region40
        $region39: #{tpu_custom_call.1} parent=27 // pred_region
          %v228 = vld [vmem:[%s186] sm:$0xff]
          %v229 = vld [vmem:[%s186 + $0x8] sm:$0xff]
          %v230 = vld [vmem:[%s186 + $0x10] sm:$0xff]
          %v231 = vld [vmem:[%s186 + $0x18] sm:$0xff]
          %v232 = vld [vmem:[%s186 + $0x20] sm:$0xff]
          %v233 = vld [vmem:[%s186 + $0x28] sm:$0xff]
          %v234 = vld [vmem:[%s186 + $0x30] sm:$0xff]
          %v235 = vld [vmem:[%s186 + $0x38] sm:$0xff]
          %v236 = vld [vmem:[%s186 + $0x40] sm:$0xff]
          %v237 = vld [vmem:[%s186 + $0x48] sm:$0xff]
          %v238 = vld [vmem:[%s186 + $0x50] sm:$0xff]
          %v239 = vld [vmem:[%s186 + $0x58] sm:$0xff]
          %v240 = vld [vmem:[%s186 + $0x60] sm:$0xff]
          %v241 = vld [vmem:[%s186 + $0x68] sm:$0xff]
          %v242 = vld [vmem:[%s186 + $0x70] sm:$0xff]
          %v243 = vld [vmem:[%s186 + $0x78] sm:$0xff]
          %v244 = vld [vmem:[%s186 + $0x80] sm:$0xff]
          %v245 = vld [vmem:[%s186 + $0x88] sm:$0xff]
          %v246 = vld [vmem:[%s186 + $0x90] sm:$0xff]
          %v247 = vld [vmem:[%s186 + $0x98] sm:$0xff]
          %v248 = vld [vmem:[%s186 + $0xa0] sm:$0xff]
          %v249 = vld [vmem:[%s186 + $0xa8] sm:$0xff]
          %v250 = vld [vmem:[%s186 + $0xb0] sm:$0xff]
          %v251 = vld [vmem:[%s186 + $0xb8] sm:$0xff]
          %v252 = vld [vmem:[%s186 + $0xc0] sm:$0xff]
          %v253 = vld [vmem:[%s186 + $0xc8] sm:$0xff]
          %v254 = vld [vmem:[%s186 + $0xd0] sm:$0xff]
          %v255 = vld [vmem:[%s186 + $0xd8] sm:$0xff]
          %v256 = vld [vmem:[%s186 + $0xe0] sm:$0xff]
          %v257 = vld [vmem:[%s186 + $0xe8] sm:$0xff]
          %v258 = vld [vmem:[%s186 + $0xf0] sm:$0xff]
          %v259 = vld [vmem:[%s186 + $0xf8] sm:$0xff]
          %v260 = vadd.f32 %v228, %v229
          %261 = vadd.xlane.f32.xlu0 %v260
          %v262 = vpop.xlane.xlu0 %261
          %v263 = vadd.f32 %v230, %v231
          %264 = vadd.xlane.f32.xlu0 %v263
          %v265 = vpop.xlane.xlu0 %264
          %v266 = vadd.f32 %v232, %v233
          %267 = vadd.xlane.f32.xlu0 %v266
          %v268 = vpop.xlane.xlu0 %267
          %v269 = vadd.f32 %v234, %v235
          %270 = vadd.xlane.f32.xlu0 %v269
          %v271 = vpop.xlane.xlu0 %270
          %v272 = vadd.f32 %v236, %v237
          %273 = vadd.xlane.f32.xlu0 %v272
          %v274 = vpop.xlane.xlu0 %273
          %v275 = vadd.f32 %v238, %v239
          %276 = vadd.xlane.f32.xlu0 %v275
          %v277 = vpop.xlane.xlu0 %276
          %v278 = vadd.f32 %v240, %v241
          %279 = vadd.xlane.f32.xlu0 %v278
          %v280 = vpop.xlane.xlu0 %279
          %v281 = vadd.f32 %v242, %v243
          %282 = vadd.xlane.f32.xlu0 %v281
          %v283 = vpop.xlane.xlu0 %282
          %v284 = vadd.f32 %v244, %v245
          %285 = vadd.xlane.f32.xlu0 %v284
          %v286 = vpop.xlane.xlu0 %285
          %v287 = vadd.f32 %v246, %v247
          %288 = vadd.xlane.f32.xlu0 %v287
          %v289 = vpop.xlane.xlu0 %288
          %v290 = vadd.f32 %v248, %v249
          %291 = vadd.xlane.f32.xlu0 %v290
          %v292 = vpop.xlane.xlu0 %291
          %v293 = vadd.f32 %v250, %v251
          %294 = vadd.xlane.f32.xlu0 %v293
          %v295 = vpop.xlane.xlu0 %294
          %v296 = vadd.f32 %v252, %v253
          %297 = vadd.xlane.f32.xlu0 %v296
          %v298 = vpop.xlane.xlu0 %297
          %v299 = vadd.f32 %v254, %v255
          %300 = vadd.xlane.f32.xlu0 %v299
          %v301 = vpop.xlane.xlu0 %300
          %v302 = vadd.f32 %v256, %v257
          %303 = vadd.xlane.f32.xlu0 %v302
          %v304 = vpop.xlane.xlu0 %303
          %v305 = vadd.f32 %v258, %v259
          %306 = vadd.xlane.f32.xlu0 %v305
          %v307 = vpop.xlane.xlu0 %306
          %v308 = vrsqrt.pop %v262
          %v309 = vrsqrt.pop %v265
          %v310 = vrsqrt.pop %v268
          %v311 = vrsqrt.pop %v271
          %v312 = vrsqrt.pop %v274
          %v313 = vrsqrt.pop %v277
          %v314 = vrsqrt.pop %v280
          %v315 = vrsqrt.pop %v283
          %v316 = vrsqrt.pop %v286
          %v317 = vrsqrt.pop %v289
          %v318 = vrsqrt.pop %v292
          %v319 = vrsqrt.pop %v295
          %v320 = vrsqrt.pop %v298
          %v321 = vrsqrt.pop %v301
          %v322 = vrsqrt.pop %v304
          %v323 = vrsqrt.pop %v307
          %v324 = vmul.f32 %v308, %v308
          %v325 = vmul.f32 %v309, %v309
          %v326 = vmul.f32 %v310, %v310
          %v327 = vmul.f32 %v311, %v311
          %v328 = vmul.f32 %v312, %v312
          %v329 = vmul.f32 %v313, %v313
          %v330 = vmul.f32 %v314, %v314
          %v331 = vmul.f32 %v315, %v315
          %v332 = vmul.f32 %v316, %v316
          %v333 = vmul.f32 %v317, %v317
          %v334 = vmul.f32 %v318, %v318
          %v335 = vmul.f32 %v319, %v319
          %v336 = vmul.f32 %v320, %v320
          %v337 = vmul.f32 %v321, %v321
          %v338 = vmul.f32 %v322, %v322
          %v339 = vmul.f32 %v323, %v323
          %vm340 = vcmask 7168
          %341 = vst.msk [vmem:[#allocation2] sm:$0xff] %vm340, %v324
          %342 = vst.msk [vmem:[#allocation2 + $0x8] sm:$0xff] %vm340, %v325
          %343 = vst.msk [vmem:[#allocation2 + $0x10] sm:$0xff] %vm340, %v326
          %344 = vst.msk [vmem:[#allocation2 + $0x18] sm:$0xff] %vm340, %v327
          %345 = vst.msk [vmem:[#allocation2 + $0x20] sm:$0xff] %vm340, %v328
          %346 = vst.msk [vmem:[#allocation2 + $0x28] sm:$0xff] %vm340, %v329
          %347 = vst.msk [vmem:[#allocation2 + $0x30] sm:$0xff] %vm340, %v330
          %348 = vst.msk [vmem:[#allocation2 + $0x38] sm:$0xff] %vm340, %v331
          %349 = vst.msk [vmem:[#allocation2 + $0x40] sm:$0xff] %vm340, %v332
          %350 = vst.msk [vmem:[#allocation2 + $0x48] sm:$0xff] %vm340, %v333
          %351 = vst.msk [vmem:[#allocation2 + $0x50] sm:$0xff] %vm340, %v334
          %352 = vst.msk [vmem:[#allocation2 + $0x58] sm:$0xff] %vm340, %v335
          %353 = vst.msk [vmem:[#allocation2 + $0x60] sm:$0xff] %vm340, %v336
          %354 = vst.msk [vmem:[#allocation2 + $0x68] sm:$0xff] %vm340, %v337
          %355 = vst.msk [vmem:[#allocation2 + $0x70] sm:$0xff] %vm340, %v338
          %356 = vst.msk [vmem:[#allocation2 + $0x78] sm:$0xff] %vm340, %v339
        $region40: #{tpu_custom_call.1} parent=27 // pred_fallthru
          _
        %p357 = scmp.ne.s32.totalorder %s27, %s26
        // Predicated region
        $region41: #{tpu_custom_call.1} parent=27 // pred_check
          %p358 = pneg %p357
        $region42: #{tpu_custom_call.1} parent=27 // pred_check_branch
          %360 = sbr.rel (%p358) target = $region44
        $region43: #{tpu_custom_call.1} parent=27 // pred_region
          %361 = vst [vmem:[%s220] sm:$0xff] 0.0
          %362 = vst [vmem:[%s220 + $0x8] sm:$0xff] 0.0
          %363 = vst [vmem:[%s220 + $0x10] sm:$0xff] 0.0
          %364 = vst [vmem:[%s220 + $0x18] sm:$0xff] 0.0
          %365 = vst [vmem:[%s220 + $0x20] sm:$0xff] 0.0
          %366 = vst [vmem:[%s220 + $0x28] sm:$0xff] 0.0
          %367 = vst [vmem:[%s220 + $0x30] sm:$0xff] 0.0
          %368 = vst [vmem:[%s220 + $0x38] sm:$0xff] 0.0
          %369 = vst [vmem:[%s220 + $0x40] sm:$0xff] 0.0
          %370 = vst [vmem:[%s220 + $0x48] sm:$0xff] 0.0
          %371 = vst [vmem:[%s220 + $0x50] sm:$0xff] 0.0
          %372 = vst [vmem:[%s220 + $0x58] sm:$0xff] 0.0
          %373 = vst [vmem:[%s220 + $0x60] sm:$0xff] 0.0
          %374 = vst [vmem:[%s220 + $0x68] sm:$0xff] 0.0
          %375 = vst [vmem:[%s220 + $0x70] sm:$0xff] 0.0
          %376 = vst [vmem:[%s220 + $0x78] sm:$0xff] 0.0
        $region44: #{tpu_custom_call.1} parent=27 // pred_fallthru
          _
        %p377 = scmp.eq.s32.totalorder %s27, %s26
        // Predicated region
        $region45: #{tpu_custom_call.1} parent=27 // pred_check
          %p378 = pneg %p377
        $region46: #{tpu_custom_call.1} parent=27 // pred_check_branch
          %380 = sbr.rel (%p378) target = $region48
        $region47: #{tpu_custom_call.1} parent=27 // pred_region
          %v381 = vlaneseq
          %v382 = vshrl.u32 %v381, 7
          %v383 = vadd.s32 %v382, 8
          %v384 = vadd.s32 %v382, 16
          %v385 = vadd.s32 %v382, 24
          %v386 = vadd.s32 %v382, 32
          %v387 = vadd.s32 %v382, 40
          %v388 = vadd.s32 %v382, 48
          %v389 = vadd.s32 %v382, 56
          %v390 = vadd.s32 %v382, 64
          %v391 = vadd.s32 %v382, 72
          %v392 = vadd.s32 %v382, 80
          %v393 = vadd.s32 %v382, 88
          %v394 = vadd.s32 %v382, 96
          %v395 = vadd.s32 %v382, 104
          %v396 = vadd.s32 %v382, 112
          %v397 = vadd.s32 %v382, 120
          %v398 = vlaneseq
          %v399 = vand.u32 %v398, 127
          %v400 = vld [vmem:[%s195] sm:$0xff]
          %v401 = vld [vmem:[%s195 + $0x8] sm:$0xff]
          %v402 = vld [vmem:[%s195 + $0x10] sm:$0xff]
          %v403 = vld [vmem:[%s195 + $0x18] sm:$0xff]
          %v404 = vld [vmem:[%s195 + $0x20] sm:$0xff]
          %v405 = vld [vmem:[%s195 + $0x28] sm:$0xff]
          %v406 = vld [vmem:[%s195 + $0x30] sm:$0xff]
          %v407 = vld [vmem:[%s195 + $0x38] sm:$0xff]
          %v408 = vld [vmem:[%s195 + $0x40] sm:$0xff]
          %v409 = vld [vmem:[%s195 + $0x48] sm:$0xff]
          %v410 = vld [vmem:[%s195 + $0x50] sm:$0xff]
          %v411 = vld [vmem:[%s195 + $0x58] sm:$0xff]
          %v412 = vld [vmem:[%s195 + $0x60] sm:$0xff]
          %v413 = vld [vmem:[%s195 + $0x68] sm:$0xff]
          %v414 = vld [vmem:[%s195 + $0x70] sm:$0xff]
          %v415 = vld [vmem:[%s195 + $0x78] sm:$0xff]
          %v416 = vadd.f32 %v400, 1.0
          %v417 = vadd.f32 %v401, 1.0
          %v418 = vadd.f32 %v402, 1.0
          %v419 = vadd.f32 %v403, 1.0
          %v420 = vadd.f32 %v404, 1.0
          %v421 = vadd.f32 %v405, 1.0
          %v422 = vadd.f32 %v406, 1.0
          %v423 = vadd.f32 %v407, 1.0
          %v424 = vadd.f32 %v408, 1.0
          %v425 = vadd.f32 %v409, 1.0
          %v426 = vadd.f32 %v410, 1.0
          %v427 = vadd.f32 %v411, 1.0
          %v428 = vadd.f32 %v412, 1.0
          %v429 = vadd.f32 %v413, 1.0
          %v430 = vadd.f32 %v414, 1.0
          %v431 = vadd.f32 %v415, 1.0
          %v432 = vld [vmem:[#allocation2] sm:$0xff]
          %v433 = vld [vmem:[#allocation2 + $0x8] sm:$0xff]
          %v434 = vld [vmem:[#allocation2 + $0x10] sm:$0xff]
          %v435 = vld [vmem:[#allocation2 + $0x18] sm:$0xff]
          %v436 = vld [vmem:[#allocation2 + $0x20] sm:$0xff]
          %v437 = vld [vmem:[#allocation2 + $0x28] sm:$0xff]
          %v438 = vld [vmem:[#allocation2 + $0x30] sm:$0xff]
          %v439 = vld [vmem:[#allocation2 + $0x38] sm:$0xff]
          %v440 = vld [vmem:[#allocation2 + $0x40] sm:$0xff]
          %v441 = vld [vmem:[#allocation2 + $0x48] sm:$0xff]
          %v442 = vld [vmem:[#allocation2 + $0x50] sm:$0xff]
          %v443 = vld [vmem:[#allocation2 + $0x58] sm:$0xff]
          %v444 = vld [vmem:[#allocation2 + $0x60] sm:$0xff]
          %v445 = vld [vmem:[#allocation2 + $0x68] sm:$0xff]
          %v446 = vld [vmem:[#allocation2 + $0x70] sm:$0xff]
          %v447 = vld [vmem:[#allocation2 + $0x78] sm:$0xff]
          %449 = vset.pattern.permute.xlu0 0
          %450 = vperm.xlu0 %449, %v432
          %v451 = vpop.permute.xlu0 %450
          %454 = vset.pattern.permute.xlu0 0
          %455 = vperm.xlu0 %454, %v433
          %v456 = vpop.permute.xlu0 %455
          %459 = vset.pattern.permute.xlu0 0
          %460 = vperm.xlu0 %459, %v434
          %v461 = vpop.permute.xlu0 %460
          %464 = vset.pattern.permute.xlu0 0
          %465 = vperm.xlu0 %464, %v435
          %v466 = vpop.permute.xlu0 %465
          %469 = vset.pattern.permute.xlu0 0
          %470 = vperm.xlu0 %469, %v436
          %v471 = vpop.permute.xlu0 %470
          %474 = vset.pattern.permute.xlu0 0
          %475 = vperm.xlu0 %474, %v437
          %v476 = vpop.permute.xlu0 %475
          %479 = vset.pattern.permute.xlu0 0
          %480 = vperm.xlu0 %479, %v438
          %v481 = vpop.permute.xlu0 %480
          %484 = vset.pattern.permute.xlu0 0
          %485 = vperm.xlu0 %484, %v439
          %v486 = vpop.permute.xlu0 %485
          %489 = vset.pattern.permute.xlu0 0
          %490 = vperm.xlu0 %489, %v440
          %v491 = vpop.permute.xlu0 %490
          %494 = vset.pattern.permute.xlu0 0
          %495 = vperm.xlu0 %494, %v441
          %v496 = vpop.permute.xlu0 %495
          %499 = vset.pattern.permute.xlu0 0
          %500 = vperm.xlu0 %499, %v442
          %v501 = vpop.permute.xlu0 %500
          %504 = vset.pattern.permute.xlu0 0
          %505 = vperm.xlu0 %504, %v443
          %v506 = vpop.permute.xlu0 %505
          %509 = vset.pattern.permute.xlu0 0
          %510 = vperm.xlu0 %509, %v444
          %v511 = vpop.permute.xlu0 %510
          %514 = vset.pattern.permute.xlu0 0
          %515 = vperm.xlu0 %514, %v445
          %v516 = vpop.permute.xlu0 %515
          %519 = vset.pattern.permute.xlu0 0
          %520 = vperm.xlu0 %519, %v446
          %v521 = vpop.permute.xlu0 %520
          %524 = vset.pattern.permute.xlu0 0
          %525 = vperm.xlu0 %524, %v447
          %v526 = vpop.permute.xlu0 %525
          %v528 = vmul.f32 %v416, %v451
          %v529 = vmul.f32 %v417, %v456
          %v530 = vmul.f32 %v418, %v461
          %v531 = vmul.f32 %v419, %v466
          %v532 = vmul.f32 %v420, %v471
          %v533 = vmul.f32 %v421, %v476
          %v534 = vmul.f32 %v422, %v481
          %v535 = vmul.f32 %v423, %v486
          %v536 = vmul.f32 %v424, %v491
          %v537 = vmul.f32 %v425, %v496
          %v538 = vmul.f32 %v426, %v501
          %v539 = vmul.f32 %v427, %v506
          %v540 = vmul.f32 %v428, %v511
          %v541 = vmul.f32 %v429, %v516
          %v542 = vmul.f32 %v430, %v521
          %v543 = vmul.f32 %v431, %v526
          %vm544 = vcmp.eq.s32.totalorder %v382, %v399
          %vm545 = vcmp.eq.s32.totalorder %v383, %v399
          %vm546 = vcmp.eq.s32.totalorder %v384, %v399
          %vm547 = vcmp.eq.s32.totalorder %v385, %v399
          %vm548 = vcmp.eq.s32.totalorder %v386, %v399
          %vm549 = vcmp.eq.s32.totalorder %v387, %v399
          %vm550 = vcmp.eq.s32.totalorder %v388, %v399
          %vm551 = vcmp.eq.s32.totalorder %v389, %v399
          %vm552 = vcmp.eq.s32.totalorder %v390, %v399
          %vm553 = vcmp.eq.s32.totalorder %v391, %v399
          %vm554 = vcmp.eq.s32.totalorder %v392, %v399
          %vm555 = vcmp.eq.s32.totalorder %v393, %v399
          %vm556 = vcmp.eq.s32.totalorder %v394, %v399
          %vm557 = vcmp.eq.s32.totalorder %v395, %v399
          %vm558 = vcmp.eq.s32.totalorder %v396, %v399
          %vm559 = vcmp.eq.s32.totalorder %v397, %v399
          %v560 = vsel %vm544, %v528, 0.0
          %v561 = vsel %vm545, %v529, 0.0
          %v562 = vsel %vm546, %v530, 0.0
          %v563 = vsel %vm547, %v531, 0.0
          %v564 = vsel %vm548, %v532, 0.0
          %v565 = vsel %vm549, %v533, 0.0
          %v566 = vsel %vm550, %v534, 0.0
          %v567 = vsel %vm551, %v535, 0.0
          %v568 = vsel %vm552, %v536, 0.0
          %v569 = vsel %vm553, %v537, 0.0
          %v570 = vsel %vm554, %v538, 0.0
          %v571 = vsel %vm555, %v539, 0.0
          %v572 = vsel %vm556, %v540, 0.0
          %v573 = vsel %vm557, %v541, 0.0
          %v574 = vsel %vm558, %v542, 0.0
          %v575 = vsel %vm559, %v543, 0.0
          %576 = vst [vmem:[%s220] sm:$0xff] %v560
          %577 = vst [vmem:[%s220 + $0x8] sm:$0xff] %v561
          %578 = vst [vmem:[%s220 + $0x10] sm:$0xff] %v562
          %579 = vst [vmem:[%s220 + $0x18] sm:$0xff] %v563
          %580 = vst [vmem:[%s220 + $0x20] sm:$0xff] %v564
          %581 = vst [vmem:[%s220 + $0x28] sm:$0xff] %v565
          %582 = vst [vmem:[%s220 + $0x30] sm:$0xff] %v566
          %583 = vst [vmem:[%s220 + $0x38] sm:$0xff] %v567
          %584 = vst [vmem:[%s220 + $0x40] sm:$0xff] %v568
          %585 = vst [vmem:[%s220 + $0x48] sm:$0xff] %v569
          %586 = vst [vmem:[%s220 + $0x50] sm:$0xff] %v570
          %587 = vst [vmem:[%s220 + $0x58] sm:$0xff] %v571
          %588 = vst [vmem:[%s220 + $0x60] sm:$0xff] %v572
          %589 = vst [vmem:[%s220 + $0x68] sm:$0xff] %v573
          %590 = vst [vmem:[%s220 + $0x70] sm:$0xff] %v574
          %591 = vst [vmem:[%s220 + $0x78] sm:$0xff] %v575
        $region48: #{tpu_custom_call.1} parent=27 // pred_fallthru
          _
        %s592 = sand.u32 %s98, 1
        %s593 = scalar_lea.sflag [#allocation5], %s592
        %s594 = sand.u32 %s98, 1
        %s595 = smul.addr %s594, 128
        %s596 = scalar_lea.vmem [#allocation8], %s595
        // Predicated region
        $region49: #{tpu_custom_call.1} parent=27 // pred_check
          %p597 = pneg %p108
        $region50: #{tpu_custom_call.1} parent=27 // pred_check_branch
          %599 = sbr.rel (%p597) target = $region52
        $region51: #{tpu_custom_call.1} parent=27 // pred_region
          %s600 = smul.u32 16, %s26
          %s602 = ssub.s32 2048, 2048
          %603 = vsyncadd %s593, %s602
          %s604 = smul.addr %s600, 2
          %s605 = sadd.s32 %s27, %s604
          %s606 = smul.addr %s605, 128
          %s607 = scalar_lea.hbm %s2, %s606
          %s608 = sshll.u32 %s596, 4
          %s609 = int_to_ptr.vmem [resolvable:$true] %s608
          %614 = dma.vmem_to_hbm [thread:$0]  %s609, 2048, %s607, %s593, 128, 256, 8
        $region52: #{tpu_custom_call.1} parent=27 // pred_fallthru
          _
      $region28: #{tpu_custom_call.1} parent=5 // pred_fallthru
        _
      %p615 = scmp.le.s32.totalorder 2, %s17
      // Predicated region
      $region53: #{tpu_custom_call.1} parent=5 // pred_check
        %p616 = pneg %p615
      $region54: #{tpu_custom_call.1} parent=5 // pred_check_branch
        %618 = sbr.rel (%p616) target = $region56
      $region55: #{tpu_custom_call.1} parent=5 // pred_region
        %s619 = ssub.s32 %s17, 2
        // Predicated region
        $region57: #{tpu_custom_call.1} parent=55 // pred_check
          %p620 = pneg %p114
        $region58: #{tpu_custom_call.1} parent=55 // pred_check_branch
          %622 = sbr.rel (%p620) target = $region60
        $region59: #{tpu_custom_call.1} parent=55 // pred_region
          %s623 = sand.u32 %s99, 1
          %s624 = scalar_lea.sflag [#allocation5], %s623
          %s625 = sand.u32 %s99, 1
          %s626 = smul.addr %s625, 128
          %s627 = scalar_lea.vmem [#allocation8], %s626
          %628 = dma.done %s624, 2048
        $region60: #{tpu_custom_call.1} parent=55 // pred_fallthru
          _
      $region56: #{tpu_custom_call.1} parent=5 // pred_fallthru
        _
    $region6: #{tpu_custom_call.1} parent=1 // loop_footer
      %s21 = sadd.s32 1, %s17
    $region7: #{tpu_custom_call.1} parent=1 // loop_footer_branch
      %16 = sbr.rel target = $region3
    $region8: #{tpu_custom_call.1} parent=1 // loop_exit
      _
    %629 = vsyncpa [#allocation4], 1
    %s630 = scalar_lea.sflag [#allocation4], 1
    %631 = vsyncpa %s630, 1
    %632 = vsyncpa [#allocation7], 1
    %s633 = scalar_lea.sflag [#allocation7], 1
    %634 = vsyncpa %s633, 1
    %635 = vsyncpa [#allocation5], 1
    %s636 = scalar_lea.sflag [#allocation5], 1
    %637 = vsyncpa %s636, 1

</llo_original>
